<compile_context>
chip_gen: v6e
topology: v6e:2x2x1
jax: 0.10.0
libtpu: 0.0.40
codegen_flags: <defaults>
</compile_context>

<pallas_src>
import functools

import jax
import jax.numpy as jnp
from jax.experimental import pallas as pl
from jax.experimental.pallas import tpu as pltpu

LANE = 128      # lane width: the tiny out_score axis is padded to this internally
SUBLANE = 8     # sublane tile height (f32)


def rev_kernel(x_ref, w_ref, b_ref, out_ref, *, valid_s, compute_dtype):
    """One grid step handles `b_tile` whole softmax groups.

    x_ref   : VMEM [b_tile * S_pad, E]   original input dtype (f32); cast in-register
    w_ref   : VMEM [E, O_pad]            compute dtype, zero-padded lanes
    b_ref   : VMEM [1, O_pad]            f32, zero-padded lanes
    out_ref : VMEM [b_tile, S_pad, O]    unpadded last dim (only useful lanes stored)
    """
    b_tile, s_pad, o = out_ref.shape
    o_pad = w_ref.shape[1]

    x = x_ref[...]
    if x.dtype != compute_dtype:
        x = x.astype(compute_dtype)          # VPU cast: free filler, mem-bound kernel

    # Linear projection for all rows of this block: one lane-dense MXU matmul.
    logits = jnp.dot(x, w_ref[...], preferred_element_type=jnp.float32)  # [b_tile*S_pad, O_pad]
    logits = (logits + b_ref[...]).reshape(b_tile, s_pad, o_pad)
    # S_pad is a multiple of 8, so this reshape is an aligned no-op relayout.

    if valid_s != s_pad:
        # Fallback path (S not a multiple of 8): padded rows must not contribute
        # to the softmax over the S axis.
        row = jax.lax.broadcasted_iota(jnp.int32, (b_tile, s_pad, o_pad), 1)
        logits = jnp.where(row < valid_s, logits, -jnp.inf)

    # Softmax over the group axis S (== dim=-2 of the [B, S, O] output).
    m = jnp.max(logits, axis=1, keepdims=True)
    ex = jnp.exp(logits - m)
    denom = jnp.sum(ex, axis=1, keepdims=True)
    inv = pl.reciprocal(denom, approx=True)        # EUP slot (shared with exp)
    inv = inv * (2.0 - denom * inv)                # one Newton step -> ~f32 exact
    probs = ex * inv                               # [b_tile, S_pad, O_pad]

    # Store only the O useful lanes (masked vst is far cheaper than 32x HBM writes).
    out_ref[...] = probs[:, :, :o].astype(out_ref.dtype)


def _pick_b_tile(batch, s_pad, emb_dim, o_pad, out_score, x_itemsize,
                 vmem_budget_bytes, min_steps=4):
    """Largest #groups per grid step under an honest per-block VMEM estimate,
    capped so there are >= min_steps grid steps, preferring an exact divisor
    of batch so the wrapper never has to pad/copy x."""
    per_group = (
        2 * s_pad * emb_dim * x_itemsize     # x block, double-buffered by Pallas
        + 2 * s_pad * out_score * 4          # output block (f32), double-buffered
        + 2 * s_pad * o_pad * 4              # f32 logits + ex temporaries
        + s_pad * emb_dim * 2                # in-register bf16 copy of the x block
    )
    fixed = 2 * (emb_dim * o_pad * 2 + o_pad * 4)          # weight + bias blocks
    cap_vmem = max(1, (vmem_budget_bytes - fixed) // max(per_group, 1))
    cap_steps = max(1, pl.cdiv(batch, min_steps))           # keep >= min_steps steps
    cap = max(1, min(batch, cap_vmem, cap_steps))
    # Prefer a tile that divides batch exactly (avoids a wrapper-side pad copy).
    div = next(t for t in range(cap, 0, -1) if batch % t == 0)
    if div >= max(1, cap // 2):
        return div
    return cap   # pathological batch: pad a few groups rather than use tiny tiles


def rev_forward(x, weight, bias, *, compute_dtype=jnp.bfloat16,
                out_dtype=jnp.float32,
                vmem_block_budget_bytes=16 * 1024 * 1024):
    """Pallas forward of `Rev`: softmax(Linear(x), dim=-2).

    x      : [B, S, emb_dim] (or [S, emb_dim]) float32
    weight : [out_score, emb_dim]   (PyTorch Linear layout)
    bias   : [out_score]
    returns: [B, S, out_score] (or [S, out_score]) in out_dtype
    """
    squeeze = x.ndim == 2
    if squeeze:
        x = x[None]
    B, S, E = x.shape
    O = weight.shape[0]
    o_pad = max(LANE, ((O + LANE - 1) // LANE) * LANE)

    # Lane-padded parameters (tiny, one-time cast). Bias stays f32.
    w_t = jnp.zeros((E, o_pad), dtype=compute_dtype).at[:, :O].set(
        weight.T.astype(compute_dtype))
    b_pad = jnp.zeros((1, o_pad), dtype=jnp.float32).at[:, :O].set(
        bias.reshape(1, O).astype(jnp.float32))

    # Pad S to a sublane multiple only if needed (masked with -inf in-kernel).
    s_pad = ((S + SUBLANE - 1) // SUBLANE) * SUBLANE
    if s_pad != S:
        x = jnp.pad(x, ((0, 0), (0, s_pad - S), (0, 0)))

    b_tile = _pick_b_tile(B, s_pad, E, o_pad, O, x.dtype.itemsize,
                          vmem_block_budget_bytes)
    grid_b = pl.cdiv(B, b_tile)
    b_padded = grid_b * b_tile
    if b_padded != B:
        # Rare path (b_tile not a divisor of B): padded groups yield a harmless
        # uniform softmax and are sliced off below.
        x = jnp.pad(x, ((0, b_padded - B), (0, 0), (0, 0)))

    # Metadata-only reshape; x keeps its original dtype (cast happens in-kernel).
    x_flat = x.reshape(b_padded * s_pad, E)

    kernel = functools.partial(rev_kernel, valid_s=S, compute_dtype=compute_dtype)

    cost = pl.CostEstimate(
        flops=2 * b_padded * s_pad * E * o_pad,
        transcendentals=b_padded * s_pad * o_pad,
        bytes_accessed=(x_flat.size * x_flat.dtype.itemsize
                        + w_t.size * w_t.dtype.itemsize
                        + b_pad.size * 4
                        + b_padded * s_pad * O * jnp.dtype(out_dtype).itemsize),
    )

    out = pl.pallas_call(
        kernel,
        out_shape=jax.ShapeDtypeStruct((b_padded, s_pad, O), out_dtype),
        grid=(grid_b,),
        in_specs=[
            pl.BlockSpec((b_tile * s_pad, E), lambda i: (i, 0)),
            pl.BlockSpec((E, o_pad), lambda i: (0, 0)),   # constant index: fetched once
            pl.BlockSpec((1, o_pad), lambda i: (0, 0)),
        ],
        out_specs=pl.BlockSpec((b_tile, s_pad, O), lambda i: (i, 0, 0)),
        compiler_params=pltpu.CompilerParams(
            dimension_semantics=("parallel",),            # both TCs on v7x
            vmem_limit_bytes=32 * 1024 * 1024,
        ),
        cost_estimate=cost,
    )(x_flat, w_t, b_pad)

    if b_padded != B or s_pad != S:
        out = out[:B, :S]
    return out[0] if squeeze else out


def rev_reference(x, weight, bias, compute_dtype=jnp.bfloat16):
    """Pure-JAX reference with the same bf16 matmul cast as the kernel."""
    rev = jnp.dot(x.astype(compute_dtype), weight.T.astype(compute_dtype),
                  preferred_element_type=jnp.float32) + bias.astype(jnp.float32)
    return jax.nn.softmax(rev, axis=-2)


if __name__ == "__main__":
    # Small deterministic shapes consistent with the module's forward:
    # batch=2 groups, seq=8 rows per group, emb_dim=32, out_score=4.
    B, S, emb_dim, out_score = 2, 8, 32, 4

    key = jax.random.PRNGKey(0)
    kx, kw, kb = jax.random.split(key, 3)

    x = jax.random.normal(kx, (B, S, emb_dim), dtype=jnp.float32)
    weight = (jax.random.uniform(kw, (out_score, emb_dim), dtype=jnp.float32) - 0.5) * 0.2
    bias = (jax.random.uniform(kb, (out_score,), dtype=jnp.float32) - 0.5) * 0.2

    out = rev_forward(x, weight, bias)
    out = jax.block_until_ready(out)

    ref = rev_reference(x, weight, bias)
    assert out.shape == (B, S, out_score)
    assert jnp.allclose(out, ref, atol=1e-3, rtol=1e-3), "mismatch vs. pure-JAX reference"
    # softmax over dim=-2 => each column sums to 1
    assert jnp.allclose(jnp.sum(out, axis=-2), 1.0, atol=1e-3)

    print("KERNEL_OK")
</pallas_src>

<mosaic_0001>
module attributes {stable_mosaic.version = 11 : i64} {
  func.func @rev_kernel(%arg0: i32, %arg1: memref<8x32xf32, #tpu.memory_space<vmem>>, %arg2: memref<32x128xbf16, #tpu.memory_space<vmem>>, %arg3: memref<1x128xf32, #tpu.memory_space<vmem>>, %arg4: memref<1x8x4xf32, #tpu.memory_space<vmem>>) attributes {dimension_semantics = [#tpu.dimension_semantics<parallel>], iteration_bounds = array<i64: 2>, scalar_prefetch = 0 : i64, scratch_operands = 0 : i64, tpu.core_type = #tpu.core_type<tc>, window_params = [{transform_indices = @transform_0, window_bounds = array<i64: 8, 32>}, {pipeline_mode = #tpu.pipeline_mode<synchronous>, transform_indices = @transform_1, window_bounds = array<i64: 32, 128>}, {pipeline_mode = #tpu.pipeline_mode<synchronous>, transform_indices = @transform_2, window_bounds = array<i64: 1, 128>}, {transform_indices = @transform_3, window_bounds = array<i64: 1, 8, 4>}]} {
    %c0 = arith.constant 0 : index
    %c0_0 = arith.constant 0 : index
    %0 = vector.load %arg1[%c0, %c0_0] : memref<8x32xf32, #tpu.memory_space<vmem>>, vector<8x32xf32>
    %1 = arith.truncf %0 : vector<8x32xf32> to vector<8x32xbf16>
    %c0_1 = arith.constant 0 : index
    %c0_2 = arith.constant 0 : index
    %2 = vector.load %arg2[%c0_1, %c0_2] : memref<32x128xbf16, #tpu.memory_space<vmem>>, vector<32x128xbf16>
    %cst = arith.constant dense<0.000000e+00> : vector<8x128xf32>
    %3 = tpu.matmul %1, %2, %cst {dimension_numbers = #tpu.dot_dimension_numbers<[1], [0], [0], [1], [0, 0, 1, 1], [], []>} : vector<8x32xbf16>, vector<32x128xbf16>, vector<8x128xf32> -> vector<8x128xf32>
    %c0_3 = arith.constant 0 : index
    %c0_4 = arith.constant 0 : index
    %4 = vector.load %arg3[%c0_3, %c0_4] : memref<1x128xf32, #tpu.memory_space<vmem>>, vector<1x128xf32>
    %5 = vector.broadcast %4 : vector<1x128xf32> to vector<8x128xf32>
    %6 = arith.addf %3, %5 : vector<8x128xf32>
    %7 = vector.shape_cast %6 : vector<8x128xf32> to vector<1x8x128xf32>
    %cst_5 = arith.constant dense<0xFF800000> : vector<1x128xf32>
    %8 = vector.multi_reduction <maximumf>, %7, %cst_5 [1] : vector<1x8x128xf32> to vector<1x128xf32>
    %9 = vector.shape_cast %8 : vector<1x128xf32> to vector<1x1x128xf32>
    %10 = vector.broadcast %9 : vector<1x1x128xf32> to vector<1x8x128xf32>
    %11 = arith.subf %7, %10 : vector<1x8x128xf32>
    %12 = math.exp %11 : vector<1x8x128xf32>
    %cst_6 = arith.constant dense<0.000000e+00> : vector<1x128xf32>
    %13 = vector.multi_reduction <add>, %12, %cst_6 [1] : vector<1x8x128xf32> to vector<1x128xf32>
    %14 = vector.shape_cast %13 : vector<1x128xf32> to vector<1x1x128xf32>
    %15 = tpu.reciprocal %14 {approx = true} : vector<1x1x128xf32> -> vector<1x1x128xf32>
    %16 = arith.mulf %14, %15 : vector<1x1x128xf32>
    %cst_7 = arith.constant 2.000000e+00 : f32
    %17 = vector.broadcast %cst_7 : f32 to vector<1x1x128xf32>
    %18 = arith.subf %17, %16 : vector<1x1x128xf32>
    %19 = arith.mulf %15, %18 : vector<1x1x128xf32>
    %20 = vector.broadcast %19 : vector<1x1x128xf32> to vector<1x8x128xf32>
    %21 = arith.mulf %12, %20 : vector<1x8x128xf32>
    %22 = vector.extract_strided_slice %21 {offsets = [0, 0, 0], sizes = [1, 8, 4], strides = [1, 1, 1]} : vector<1x8x128xf32> to vector<1x8x4xf32>
    %c0_8 = arith.constant 0 : index
    %c0_9 = arith.constant 0 : index
    %c0_10 = arith.constant 0 : index
    %23 = vector.load %arg4[%c0_8, %c0_9, %c0_10] : memref<1x8x4xf32, #tpu.memory_space<vmem>>, vector<1x8x4xf32>
    tpu.vector_store %arg4[%c0_8, %c0_9, %c0_10], %22 {strides = array<i32>} : memref<1x8x4xf32, #tpu.memory_space<vmem>>, vector<1x8x4xf32>,
    return
  }
  func.func @transform_0(%arg0: i32) -> (i32, i32) {
    %c0_i32 = arith.constant 0 : i32
    %c0_i32_0 = arith.constant 0 : i32
    return %arg0, %c0_i32 : i32, i32
  }
  func.func @transform_1(%arg0: i32) -> (i32, i32) {
    %c0_i32 = arith.constant 0 : i32
    %c0_i32_0 = arith.constant 0 : i32
    %c0_i32_1 = arith.constant 0 : i32
    return %c0_i32, %c0_i32_0 : i32, i32
  }
  func.func @transform_2(%arg0: i32) -> (i32, i32) {
    %c0_i32 = arith.constant 0 : i32
    %c0_i32_0 = arith.constant 0 : i32
    %c0_i32_1 = arith.constant 0 : i32
    return %c0_i32, %c0_i32_0 : i32, i32
  }
  func.func @transform_3(%arg0: i32) -> (i32, i32, i32) {
    %c0_i32 = arith.constant 0 : i32
    %c0_i32_0 = arith.constant 0 : i32
    %c0_i32_1 = arith.constant 0 : i32
    return %arg0, %c0_i32, %c0_i32_0 : i32, i32, i32
  }
}

</mosaic_0001>

<llo_original>
// kernel: tpu_custom_call.1
$region0: #{tpu_custom_call.1}
  #allocation0 [shape = 'u32[]', space=smem, size = 0x4, offset = 0x4, fixed_abs, tag = 'smem constant byte address 0x4 - core index']
  #allocation1 [shape = 'u32[144,128]{1,0:T(1,128)}', space=vmem, size = 0x12000, scoped, tag = 'internal scratch']
  %s0 = inlined_call_operand.hbm [shape: f32[16,32], index: 0, kind: input, shape index: {}]
  %s1 = inlined_call_operand.hbm [shape: bf16[32,128], index: 1, kind: input, shape index: {}]
  %s2 = inlined_call_operand.vmem [shape: f32[1,128], index: 2, kind: input, shape index: {}]
  %s3 = inlined_call_operand.vmem [shape: f32[2,8,4], index: 3, kind: output, shape index: {}]
  %s4 = sld [smem:[#allocation0]]
  $region53: #{tpu_custom_call.1} parent=0
    _
  %s6 = ssub.s32 1, %s4
  %s7 = scalar_select 0, %s6, %s4
  $region1: #{tpu_custom_call.1} parent=0
    #allocation2 [shape = 'u8[8192]{0}', space=vmem, size = 0x2000, scoped, tag = 'input window, operand 0']
    #allocation3 [shape = 's32[2]{0}', space=sflag, size = 0x8, scoped, tag = 'scoped memory for tpu_custom_call.1']
    #allocation4 [shape = 'u8[8192]{0}', space=vmem, size = 0x2000, scoped, tag = 'input window, operand 1, single buffered']
    #allocation5 [shape = 's32[1]{0}', space=sflag, size = 0x4, scoped, tag = 'scoped memory for tpu_custom_call.1']
    %8 = vsyncpa [#allocation3], 0
    %s9 = scalar_lea.sflag [#allocation3], 1
    %10 = vsyncpa %s9, 0
    %11 = vsyncpa [#allocation5], 0
    loop: start=0, step=1, limit=4
    $region2: #{tpu_custom_call.1} parent=1 // loop_pre_header
      _
    $region3: #{tpu_custom_call.1} parent=1 // loop_header
      %s13 = sphi 0, %s17
      %p14 = scmp.ge.s32.totalorder %s13, 4
      %s23 = sphi 0, %s25
      %s26 = sphi 0, %s23
      %s27 = sphi 0, %s26
      %s43 = sphi 0, %s27
      %s47 = sphi 0, %s47
      %s49 = sphi 0, %s47
      %s50 = sphi 0, %s49
      %s64 = sphi 0, %s50
      %s68 = sphi 0, %s68
      %s70 = sphi 0, %s68
      %s71 = sphi 0, %s70
      %s85 = sphi 0, %s71
      %s91 = sphi 0, %s93
      %s94 = sphi 0, %s91
      %s95 = sphi 0, %s94
      %s111 = sphi 0, %s95
    $region4: #{tpu_custom_call.1} parent=1 // loop_header_branch
      %16 = sbr.rel (%p14) target = $region8
    $region5: #{tpu_custom_call.1} parent=1 // loop_body
      %s18 = ssub.s32 %s13, 1
      %s19 = ssub.s32 %s13, 2
      %s20 = sadd.s32 %s13, 1
      %s21 = ssub.s32 %s13, %s20
      %p22 = scmp.eq.s32.totalorder %s21, 0
      %s24 = sadd.s32 %s23, 1
      %s25 = scalar_select %p22, %s23, %s24
      %p28 = pneg %p22
      %p29 = scmp.eq.s32.totalorder %s13, 1
      %p30 = por %p28, %p29
      %p31 = scmp.ne.s32.totalorder %s23, %s26
      %p32 = scmp.eq.s32.totalorder %s13, 0
      %p33 = por %p31, %p32
      %p34 = scmp.ne.s32.totalorder %s23, %s26
      %p35 = scmp.eq.s32.totalorder %s18, 1
      %p36 = por %p34, %p35
      %p37 = scmp.ne.s32.totalorder %s26, %s27
      %p38 = scmp.eq.s32.totalorder %s18, 0
      %p39 = por %p37, %p38
      %p40 = scmp.ne.s32.totalorder %s26, %s27
      %p41 = scmp.eq.s32.totalorder %s19, 1
      %p42 = por %p40, %p41
      %p44 = scmp.ne.s32.totalorder %s27, %s43
      %p45 = scmp.eq.s32.totalorder %s19, 0
      %p46 = por %p44, %p45
      %s48 = sadd.s32 %s47, 1
      %p51 = scmp.eq.s32.totalorder %s13, 1
      %p52 = scmp.ne.s32.totalorder %s47, %s49
      %p53 = scmp.eq.s32.totalorder %s13, 0
      %p54 = por %p52, %p53
      %p55 = scmp.ne.s32.totalorder %s47, %s49
      %p56 = scmp.eq.s32.totalorder %s18, 1
      %p57 = por %p55, %p56
      %p58 = scmp.ne.s32.totalorder %s49, %s50
      %p59 = scmp.eq.s32.totalorder %s18, 0
      %p60 = por %p58, %p59
      %p61 = scmp.ne.s32.totalorder %s49, %s50
      %p62 = scmp.eq.s32.totalorder %s19, 1
      %p63 = por %p61, %p62
      %p65 = scmp.ne.s32.totalorder %s50, %s64
      %p66 = scmp.eq.s32.totalorder %s19, 0
      %p67 = por %p65, %p66
      %s69 = sadd.s32 %s68, 1
      %p72 = scmp.eq.s32.totalorder %s13, 1
      %p73 = scmp.ne.s32.totalorder %s68, %s70
      %p74 = scmp.eq.s32.totalorder %s13, 0
      %p75 = por %p73, %p74
      %p76 = scmp.ne.s32.totalorder %s68, %s70
      %p77 = scmp.eq.s32.totalorder %s18, 1
      %p78 = por %p76, %p77
      %p79 = scmp.ne.s32.totalorder %s70, %s71
      %p80 = scmp.eq.s32.totalorder %s18, 0
      %p81 = por %p79, %p80
      %p82 = scmp.ne.s32.totalorder %s70, %s71
      %p83 = scmp.eq.s32.totalorder %s19, 1
      %p84 = por %p82, %p83
      %p86 = scmp.ne.s32.totalorder %s71, %s85
      %p87 = scmp.eq.s32.totalorder %s19, 0
      %p88 = por %p86, %p87
      %s89 = ssub.s32 %s13, %s20
      %p90 = scmp.eq.s32.totalorder %s89, 0
      %s92 = sadd.s32 %s91, 1
      %s93 = scalar_select %p90, %s91, %s92
      %p96 = pneg %p90
      %p97 = scmp.eq.s32.totalorder %s13, 1
      %p98 = por %p96, %p97
      %p99 = scmp.ne.s32.totalorder %s91, %s94
      %p100 = scmp.eq.s32.totalorder %s13, 0
      %p101 = por %p99, %p100
      %p102 = scmp.ne.s32.totalorder %s91, %s94
      %p103 = scmp.eq.s32.totalorder %s18, 1
      %p104 = por %p102, %p103
      %p105 = scmp.ne.s32.totalorder %s94, %s95
      %p106 = scmp.eq.s32.totalorder %s18, 0
      %p107 = por %p105, %p106
      %p108 = scmp.ne.s32.totalorder %s94, %s95
      %p109 = scmp.eq.s32.totalorder %s19, 1
      %p110 = por %p108, %p109
      %p112 = scmp.ne.s32.totalorder %s95, %s111
      %p113 = scmp.eq.s32.totalorder %s19, 0
      %p114 = por %p112, %p113
      %p115 = scmp.le.s32.totalorder 1, %s13
      %p116 = scmp.lt.s32.totalorder %s13, 3
      %p117 = pnand %p115, %p116
      %p118 = pneg %p117
      // Predicated region
      $region9: #{tpu_custom_call.1} parent=5 // pred_check
        _
      $region10: #{tpu_custom_call.1} parent=5 // pred_check_branch
        %120 = sbr.rel (%p117) target = $region12
      $region11: #{tpu_custom_call.1} parent=5 // pred_region
        %s121 = ssub.s32 %s13, 1
        // Predicated region
        $region13: #{tpu_custom_call.1} parent=11 // pred_check
          %p122 = pneg %p60
        $region14: #{tpu_custom_call.1} parent=11 // pred_check_branch
          %124 = sbr.rel (%p122) target = $region16
        $region15: #{tpu_custom_call.1} parent=11 // pred_region
          %s126 = ssub.s32 256, 256
          %127 = vsyncadd [#allocation5], %s126
          %s128 = sshll.u32 [#allocation4], 4
          %s129 = int_to_ptr.vmem [resolvable:$true] %s128
          %134 = dma.hbm_to_vmem [thread:$0]  %s1, 256, %s129, [#allocation5], 64, 64, 4
        $region16: #{tpu_custom_call.1} parent=11 // pred_fallthru
          _
        // Predicated region
        $region17: #{tpu_custom_call.1} parent=11 // pred_check
          %p135 = pneg %p81
        $region18: #{tpu_custom_call.1} parent=11 // pred_check_branch
          %137 = sbr.rel (%p135) target = $region20
        $region19: #{tpu_custom_call.1} parent=11 // pred_region
          _
        $region20: #{tpu_custom_call.1} parent=11 // pred_fallthru
          _
      $region12: #{tpu_custom_call.1} parent=5 // pred_fallthru
        _
      %p138 = scmp.lt.s32.totalorder %s13, 2
      // Predicated region
      $region21: #{tpu_custom_call.1} parent=5 // pred_check
        %p139 = pneg %p138
      $region22: #{tpu_custom_call.1} parent=5 // pred_check_branch
        %141 = sbr.rel (%p139) target = $region24
      $region23: #{tpu_custom_call.1} parent=5 // pred_region
        // Predicated region
        $region25: #{tpu_custom_call.1} parent=23 // pred_check
          %p142 = pneg %p33
        $region26: #{tpu_custom_call.1} parent=23 // pred_check_branch
          %144 = sbr.rel (%p142) target = $region28
        $region27: #{tpu_custom_call.1} parent=23 // pred_region
          %s145 = sand.u32 %s23, 1
          %s146 = scalar_lea.sflag [#allocation3], %s145
          %s147 = sand.u32 %s23, 1
          %s148 = smul.addr %s147, 8
          %s149 = scalar_lea.vmem [#allocation2], %s148
          %s151 = ssub.s32 128, 128
          %152 = vsyncadd %s146, %s151
          %s153 = smul.addr %s13, 128
          %s154 = scalar_lea.hbm %s0, %s153
          %s156 = sshll.u32 %s149, 4
          %s157 = int_to_ptr.vmem [resolvable:$true] %s156
          %159 = dma.hbm_to_vmem [thread:$0]  %s154, 128, %s157, %s146
        $region28: #{tpu_custom_call.1} parent=23 // pred_fallthru
          _
      $region24: #{tpu_custom_call.1} parent=5 // pred_fallthru
        _
      %p160 = scmp.le.s32.totalorder 1, %s13
      %p161 = scmp.lt.s32.totalorder %s13, 3
      %p162 = pnand %p160, %p161
      %p163 = pneg %p162
      // Predicated region
      $region29: #{tpu_custom_call.1} parent=5 // pred_check
        _
      $region30: #{tpu_custom_call.1} parent=5 // pred_check_branch
        %165 = sbr.rel (%p162) target = $region32
      $region31: #{tpu_custom_call.1} parent=5 // pred_region
        %s166 = ssub.s32 %s13, 1
        %s167 = sand.u32 %s26, 1
        %s168 = scalar_lea.sflag [#allocation3], %s167
        %s169 = sand.u32 %s26, 1
        %s170 = smul.addr %s169, 8
        %s171 = scalar_lea.vmem [#allocation2], %s170
        // Predicated region
        $region33: #{tpu_custom_call.1} parent=31 // pred_check
          %p172 = pneg %p39
        $region34: #{tpu_custom_call.1} parent=31 // pred_check_branch
          %174 = sbr.rel (%p172) target = $region36
        $region35: #{tpu_custom_call.1} parent=31 // pred_region
          %175 = dma.done %s168, 128
        $region36: #{tpu_custom_call.1} parent=31 // pred_fallthru
          _
        // Predicated region
        $region37: #{tpu_custom_call.1} parent=31 // pred_check
          %p176 = pneg %p60
        $region38: #{tpu_custom_call.1} parent=31 // pred_check_branch
          %178 = sbr.rel (%p176) target = $region40
        $region39: #{tpu_custom_call.1} parent=31 // pred_region
          %179 = dma.done [#allocation5], 256
        $region40: #{tpu_custom_call.1} parent=31 // pred_fallthru
          _
        %s180 = sand.u32 %s26, 1
        %s181 = scalar_lea.sflag [#allocation3], %s180
        %s182 = sand.u32 %s26, 1
        %s183 = smul.addr %s182, 8
        %s184 = scalar_lea.vmem [#allocation2], %s183
        %p185 = pneg %p39
        %p186 = pneg %p36
        %p187 = pneg %p60
        %p188 = pneg %p57
        %p189 = pneg %p81
        %p190 = pneg %p78
        %p191 = pneg %p107
        %p192 = pneg %p104
        %p193 = scmp.lt.s32.totalorder %s18, 1
        %s194 = scalar_select %p193, %s18, 1
        %s195 = smul.addr %s194, 8
        %s196 = scalar_lea.vmem %s3, %s195
        %p197 = scmp.lt.s32.totalorder %s18, 1
        %s198 = scalar_select %p197, %s18, 1
        %s199 = smul.addr %s198, 8
        %s200 = scalar_lea.vmem %s3, %s199
        %v202 = vld [vmem:[%s171] sm:$0xff]
        %v203 = vpack.c.bf16 %v202, %v202
        %v204 = vld [vmem:[#allocation4] sm:$0xf]
        %v205 = vld [vmem:[#allocation4 + $0x4] sm:$0xf]
        %v206 = vld [vmem:[#allocation4 + $0x8] sm:$0xf]
        %v207 = vld [vmem:[#allocation4 + $0xc] sm:$0xf]
        %v208 = vld [vmem:[%s2] sm:$0x1]
        %v210 = vlaneseq
        %v211 = vshrl.u32 %v210, 7
        %v212 = vsub.s32 0, %v211
        %v213 = vrot.slane %v208, %v212
        %v219 = vunpack.c.l.b16 %v204
        %v220 = vunpack.c.l.b16 %v205
        %v221 = vunpack.c.l.b16 %v206
        %v222 = vunpack.c.l.b16 %v207
        %v223 = vpack.c.b16 %v220, %v219
        %v224 = vpack.c.b16 %v222, %v221
        %vm227 = vcmask 261120
        %v229 = vsel %vm227, %v203, 0
        %231 = vmatprep.subr.bf16.mxu0 0
        %232 = vmatpush1.bf16.msra.mxu0 0
        %233 = vmatprep.subr.bf16.mxu0 0
        %234 = vmatpush1.bf16.msra.mxu0 0
        %235 = vmatprep.subr.bf16.mxu0 0
        %236 = vmatpush1.bf16.msra.mxu0 0
        %237 = vmatprep.subr.bf16.mxu0 0
        %238 = vmatpush1.bf16.msra.mxu0 0
        %239 = vmatprep.subr.bf16.mxu0 0
        %240 = vmatpush1.bf16.msra.mxu0 0
        %241 = vmatprep.subr.bf16.mxu0 0
        %242 = vmatpush1.bf16.msra.mxu0 0
        %243 = vmatprep.subr.bf16.mxu0 0
        %244 = vmatpush1.bf16.msra.mxu0 %v224
        %245 = vmatprep.subr.bf16.mxu0 0
        %246 = vmatpush1.bf16.msra.mxu0 %v223
        %247 = vmatprep.subr.bf16.mxu0 0
        %248 = vmatpush2.bf16.msra.mxu0 0
        %249 = vmatprep.subr.bf16.mxu0 0
        %250 = vmatpush2.bf16.msra.mxu0 0
        %251 = vmatprep.subr.bf16.mxu0 0
        %252 = vmatpush2.bf16.msra.mxu0 0
        %253 = vmatprep.subr.bf16.mxu0 0
        %254 = vmatpush2.bf16.msra.mxu0 0
        %255 = vmatprep.subr.bf16.mxu0 0
        %256 = vmatpush2.bf16.msra.mxu0 0
        %257 = vmatprep.subr.bf16.mxu0 0
        %258 = vmatpush2.bf16.msra.mxu0 0
        %259 = vmatprep.subr.bf16.mxu0 0
        %260 = vmatpush2.bf16.msra.mxu0 0
        %261 = vmatprep.subr.bf16.mxu0 0
        %262 = vmatpush2.bf16.msra.mxu0 0
        %263 = vmatprep.mubr.bf16.mxu0 0
        %264 = vmatmul.mubr.bf16.gmra.mxu0 %v229
        %v265 = vpop.f32.mrf.mxu0
        %v266 = vadd.f32 %v213, %v265
        %v267 = vpop.f32.mrf.mxu0
        %v268 = vpop.f32.mrf.mxu0
        %v269 = vpop.f32.mrf.mxu0
        %270 = vdwg.mxu0
        %v271 = vrot.slane %v266, 4
        %v272 = vmax.f32 %v266, %v271
        %v273 = vrot.slane %v272, 2
        %v274 = vmax.f32 %v272, %v273
        %v275 = vrot.slane %v274, 1
        %v276 = vmax.f32 %v274, %v275
        %v277 = vsub.f32 %v266, %v276
        %v278 = vmul.f32 %v277, 1.442695
        %v279 = vpow.pop %v278
        %v280 = vrot.slane %v279, 4
        %v281 = vadd.f32 %v279, %v280
        %v282 = vrot.slane %v281, 2
        %v283 = vadd.f32 %v281, %v282
        %v284 = vrot.slane %v283, 1
        %v285 = vadd.f32 %v283, %v284
        %v286 = vrcp.pop %v285
        %v287 = vmul.f32 %v285, %v286
        %v288 = vsub.f32 2.0, %v287
        %v289 = vmul.f32 %v286, %v288
        %v290 = vmul.f32 %v279, %v289
        %vm291 = vcmask 31744
        %292 = vst.msk [vmem:[%s200] sm:$0xff] %vm291, %v290
        %p293 = scmp.lt.s32.totalorder %s18, 1
        %s294 = scalar_select %p293, %s18, 1
        %s295 = smul.addr %s294, 8
        %s296 = scalar_lea.vmem %s3, %s295
        // Predicated region
        $region41: #{tpu_custom_call.1} parent=31 // pred_check
          %p297 = pneg %p104
        $region42: #{tpu_custom_call.1} parent=31 // pred_check_branch
          %299 = sbr.rel (%p297) target = $region44
        $region43: #{tpu_custom_call.1} parent=31 // pred_region
          _
        $region44: #{tpu_custom_call.1} parent=31 // pred_fallthru
          _
      $region32: #{tpu_custom_call.1} parent=5 // pred_fallthru
        _
      %p300 = scmp.le.s32.totalorder 2, %s13
      // Predicated region
      $region45: #{tpu_custom_call.1} parent=5 // pred_check
        %p301 = pneg %p300
      $region46: #{tpu_custom_call.1} parent=5 // pred_check_branch
        %303 = sbr.rel (%p301) target = $region48
      $region47: #{tpu_custom_call.1} parent=5 // pred_region
        %s304 = ssub.s32 %s13, 2
        // Predicated region
        $region49: #{tpu_custom_call.1} parent=47 // pred_check
          %p305 = pneg %p110
        $region50: #{tpu_custom_call.1} parent=47 // pred_check_branch
          %307 = sbr.rel (%p305) target = $region52
        $region51: #{tpu_custom_call.1} parent=47 // pred_region
          %p308 = scmp.lt.s32.totalorder %s19, 1
          %s309 = scalar_select %p308, %s19, 1
          %s310 = smul.addr %s309, 8
          %s311 = scalar_lea.vmem %s3, %s310
        $region52: #{tpu_custom_call.1} parent=47 // pred_fallthru
          _
      $region48: #{tpu_custom_call.1} parent=5 // pred_fallthru
        _
    $region6: #{tpu_custom_call.1} parent=1 // loop_footer
      %s17 = sadd.s32 1, %s13
    $region7: #{tpu_custom_call.1} parent=1 // loop_footer_branch
      %12 = sbr.rel target = $region3
    $region8: #{tpu_custom_call.1} parent=1 // loop_exit
      _
    %312 = vsyncpa [#allocation3], 1
    %s313 = scalar_lea.sflag [#allocation3], 1
    %314 = vsyncpa %s313, 1
    %315 = vsyncpa [#allocation5], 1

</llo_original>
